<compile_context>
chip_gen: v5e
topology: v5e:2x2
jax: 0.10.0
libtpu: 0.0.40
codegen_flags: <defaults>
</compile_context>

<pallas_src>
import math

import jax
import jax.numpy as jnp
from jax.experimental import pallas as pl
from jax.experimental.pallas import tpu as pltpu

BN_EPS = 1e-5


def _round_up(x, m):
    return (x + m - 1) // m * m


# ------------------------------- kernel ---------------------------------

def _fc2_kernel(x_ref, w_ref, vec_ref, o_ref):
    inv_b = 1.0 / x_ref.shape[0]          # static python float
    x = x_ref[...]                        # (B, P) bf16

    vec = vec_ref[...]                    # (5, P) f32
    g1, beta1, g2, beta2, b3 = (vec[0:1], vec[1:2], vec[2:3], vec[3:4], vec[4:5])

    def batchnorm(h, gamma, beta):
        # One reduction pass over h (sum + sum-of-squares), biased variance
        # E[h^2] - E[h]^2 clamped at 0, matching torch BN1d batch stats.
        # BN folded into a single affine: the sub/mul/add broadcast chain over
        # the (B, P) tensor becomes mul/add (scale & shift are (1, P)).
        s1 = jnp.sum(h, axis=0, keepdims=True)
        s2 = jnp.sum(h * h, axis=0, keepdims=True)
        mean = s1 * inv_b
        var = jnp.maximum(s2 * inv_b - mean * mean, 0.0)
        scale = gamma * jax.lax.rsqrt(var + BN_EPS)
        shift = beta - mean * scale
        return h * scale + shift

    # ---- Linear 1 (bias dropped: cancelled by BN mean) + BN + Tanh ----
    h = jnp.dot(x, w_ref[0], preferred_element_type=jnp.float32)          # f32
    h = jnp.tanh(batchnorm(h, g1, beta1))

    # ---- Linear 2 (bias dropped) + BN + ReLU ----
    h = jnp.dot(h.astype(jnp.bfloat16), w_ref[1],
                preferred_element_type=jnp.float32)
    h = jnp.maximum(batchnorm(h, g2, beta2), 0.0)

    # ---- Linear 3 (bias kept) ----
    out = jnp.dot(h.astype(jnp.bfloat16), w_ref[2],
                  preferred_element_type=jnp.float32) + b3
    o_ref[...] = out.astype(o_ref.dtype)


# --------------------------- host-side wrappers ---------------------------

def prepare_params(params, n_input, n_hidden):
    """One-time packing: pad + cast weights, stack; pack BN vectors + b3.

    Call once per parameter set, NOT per forward.  Padding is mathematically
    exact: padded rows/cols are zero, padded hidden features stay identically
    zero through Linear/BN/tanh/relu, and padded output columns are zero.
    """
    P = _round_up(max(n_input, n_hidden), 128)

    def pad2(a, r, c):
        return jnp.pad(a, ((0, P - r), (0, P - c)))

    wstack = jnp.stack([
        pad2(params["w1"], n_input, n_hidden),
        pad2(params["w2"], n_hidden, n_hidden),
        pad2(params["w3"], n_hidden, n_input),
    ]).astype(jnp.bfloat16)                                  # (3, P, P) bf16

    def padv(a, c):
        return jnp.pad(a, ((0, 0), (0, P - c)))

    vecs = jnp.concatenate([
        padv(params["g1"], n_hidden),
        padv(params["beta1"], n_hidden),
        padv(params["g2"], n_hidden),
        padv(params["beta2"], n_hidden),
        padv(params["b3"], n_input),
    ], axis=0)                                               # (5, P) f32

    return {"wstack": wstack, "vecs": vecs, "P": P,
            "n_input": n_input, "n_hidden": n_hidden}


def _vmem_limit_bytes(B, P):
    # Resident operands (double-buffered by the runtime) + in-kernel f32
    # intermediates + fixed compiler-scratch margin.  Cap at 64 MiB so the
    # same request is valid on v7x (64 MiB physical) as well as v5e/v6e.
    resident = (
        B * P * 2            # x bf16
        + B * P * 4          # out f32
        + 3 * P * P * 2      # stacked weights bf16
        + 8 * P * 4          # packed BN/bias vectors (sublane-padded)
    )
    live_f32 = 3 * B * P * 4  # f32 activation intermediates headroom
    return int(min(2 * resident + live_f32 + (4 << 20), 64 << 20))


def fc_regression_2layers(x, prepared, *, return_padded=False):
    """x: (B, n_input) float32.  Returns (B, n_input) f32, or (B, P) if
    return_padded=True (lets a downstream consumer skip the un-pad copy)."""
    B, n_input = x.shape
    assert n_input == prepared["n_input"]
    P = prepared["P"]

    # Per-call prep is only x: zero-pad to lane-dense P and cast to bf16.
    xp = jnp.pad(x, ((0, 0), (0, P - n_input))).astype(jnp.bfloat16)

    vmem = pl.BlockSpec(memory_space=pltpu.MemorySpace.VMEM)
    out = pl.pallas_call(
        _fc2_kernel,
        out_shape=jax.ShapeDtypeStruct((B, P), jnp.float32),
        in_specs=[vmem, vmem, vmem],
        out_specs=vmem,
        compiler_params=pltpu.CompilerParams(
            vmem_limit_bytes=_vmem_limit_bytes(B, P)),
    )(xp, prepared["wstack"], prepared["vecs"])

    if return_padded:
        return out
    return out[:, :n_input]


# --------------------------- init & references ---------------------------

def _xavier_normal(key, fan_in, fan_out):
    # torch.nn.init.xavier_normal_: std = sqrt(2 / (fan_in + fan_out))
    std = math.sqrt(2.0 / (fan_in + fan_out))
    return std * jax.random.normal(key, (fan_in, fan_out), dtype=jnp.float32)


def _linear_bias(key, fan_in, fan_out):
    # PyTorch default Linear bias init: U(-1/sqrt(fan_in), 1/sqrt(fan_in))
    bound = 1.0 / math.sqrt(fan_in)
    return jax.random.uniform(
        key, (1, fan_out), minval=-bound, maxval=bound, dtype=jnp.float32)


def init_params(key, n_input, n_hidden):
    keys = jax.random.split(key, 6)
    return {
        "w1": _xavier_normal(keys[0], n_input, n_hidden),
        "b1": _linear_bias(keys[1], n_input, n_hidden),   # cancelled by BN; kept for ref
        "g1": jnp.ones((1, n_hidden), jnp.float32),
        "beta1": jnp.zeros((1, n_hidden), jnp.float32),
        "w2": _xavier_normal(keys[2], n_hidden, n_hidden),
        "b2": _linear_bias(keys[3], n_hidden, n_hidden),  # cancelled by BN; kept for ref
        "g2": jnp.ones((1, n_hidden), jnp.float32),
        "beta2": jnp.zeros((1, n_hidden), jnp.float32),
        "w3": _xavier_normal(keys[4], n_hidden, n_input),
        "b3": _linear_bias(keys[5], n_hidden, n_input),
    }


def _reference_f32(x, p):
    """Exact PyTorch-semantics forward in f32 (with the pre-BN biases)."""
    h = x @ p["w1"] + p["b1"]
    m = h.mean(0, keepdims=True)
    v = ((h - m) ** 2).mean(0, keepdims=True)
    h = (h - m) / jnp.sqrt(v + BN_EPS) * p["g1"] + p["beta1"]
    h = jnp.tanh(h)
    h = h @ p["w2"] + p["b2"]
    m = h.mean(0, keepdims=True)
    v = ((h - m) ** 2).mean(0, keepdims=True)
    h = (h - m) / jnp.sqrt(v + BN_EPS) * p["g2"] + p["beta2"]
    h = jnp.maximum(h, 0.0)
    return h @ p["w3"] + p["b3"]


def _reference_kernel_math(x, p):
    """Pure-JAX mirror of the kernel math (bias drop, bf16 dots, fused BN affine)."""
    def bn(h, g, b):
        m = h.mean(0, keepdims=True)
        v = jnp.maximum((h * h).mean(0, keepdims=True) - m * m, 0.0)
        scale = g * jax.lax.rsqrt(v + BN_EPS)
        shift = b - m * scale
        return h * scale + shift

    def dot(a, b):
        return jnp.dot(a.astype(jnp.bfloat16), b.astype(jnp.bfloat16),
                       preferred_element_type=jnp.float32)

    h = jnp.tanh(bn(dot(x, p["w1"]), p["g1"], p["beta1"]))
    h = jnp.maximum(bn(dot(h, p["w2"]), p["g2"], p["beta2"]), 0.0)
    return dot(h, p["w3"]) + p["b3"]


if __name__ == "__main__":
    key = jax.random.PRNGKey(0)
    k_x, k_p = jax.random.split(key)

    B, n_input, n_hidden = 8, 16, 32
    x = jax.random.normal(k_x, (B, n_input), dtype=jnp.float32)
    params = init_params(k_p, n_input, n_hidden)

    # One-time parameter packing (pad + bf16 cast), hoisted out of the call.
    prepared = jax.tree_util.tree_map(jax.block_until_ready,
                                      prepare_params(params, n_input, n_hidden))

    out = jax.block_until_ready(fc_regression_2layers(x, prepared))
    assert out.shape == (B, n_input)

    # Tight check vs. a pure-JAX mirror of the kernel math.
    ref_mirror = _reference_kernel_math(x, params)
    assert jnp.allclose(out, ref_mirror, atol=2e-3, rtol=2e-3), \
        "kernel vs kernel-math mirror mismatch"

    # Loose check vs. the full-f32 PyTorch-semantics reference (which DOES add
    # the pre-BN biases) -> verifies the bias-drop is an exact simplification,
    # up to bf16 matmul rounding.
    ref_f32 = _reference_f32(x, params)
    assert jnp.allclose(out, ref_f32, atol=5e-2, rtol=5e-2), \
        "kernel vs f32 reference mismatch"

    print("KERNEL_OK")
</pallas_src>

<mosaic_0001>
module attributes {stable_mosaic.version = 11 : i64} {
  func.func @_fc2_kernel(%arg0: memref<8x128xbf16, #tpu.memory_space<vmem>>, %arg1: memref<3x128x128xbf16, #tpu.memory_space<vmem>>, %arg2: memref<5x128xf32, #tpu.memory_space<vmem>>, %arg3: memref<8x128xf32, #tpu.memory_space<vmem>>) attributes {dimension_semantics = [], scalar_prefetch = 0 : i64, scratch_operands = 0 : i64, tpu.core_type = #tpu.core_type<tc>} {
    %c0 = arith.constant 0 : index
    %c0_0 = arith.constant 0 : index
    %0 = vector.load %arg0[%c0, %c0_0] : memref<8x128xbf16, #tpu.memory_space<vmem>>, vector<8x128xbf16>
    %c0_1 = arith.constant 0 : index
    %c0_2 = arith.constant 0 : index
    %1 = vector.load %arg2[%c0_1, %c0_2] : memref<5x128xf32, #tpu.memory_space<vmem>>, vector<5x128xf32>
    %2 = vector.extract_strided_slice %1 {offsets = [0, 0], sizes = [1, 128], strides = [1, 1]} : vector<5x128xf32> to vector<1x128xf32>
    %3 = vector.extract_strided_slice %1 {offsets = [1, 0], sizes = [1, 128], strides = [1, 1]} : vector<5x128xf32> to vector<1x128xf32>
    %4 = vector.extract_strided_slice %1 {offsets = [2, 0], sizes = [1, 128], strides = [1, 1]} : vector<5x128xf32> to vector<1x128xf32>
    %5 = vector.extract_strided_slice %1 {offsets = [3, 0], sizes = [1, 128], strides = [1, 1]} : vector<5x128xf32> to vector<1x128xf32>
    %6 = vector.extract_strided_slice %1 {offsets = [4, 0], sizes = [1, 128], strides = [1, 1]} : vector<5x128xf32> to vector<1x128xf32>
    %c0_3 = arith.constant 0 : index
    %c0_4 = arith.constant 0 : index
    %c0_5 = arith.constant 0 : index
    %7 = vector.load %arg1[%c0_3, %c0_4, %c0_5] : memref<3x128x128xbf16, #tpu.memory_space<vmem>>, vector<1x128x128xbf16>
    %8 = vector.shape_cast %7 : vector<1x128x128xbf16> to vector<128x128xbf16>
    %cst = arith.constant dense<0.000000e+00> : vector<8x128xf32>
    %9 = tpu.matmul %0, %8, %cst {dimension_numbers = #tpu.dot_dimension_numbers<[1], [0], [0], [1], [0, 0, 1, 1], [], []>} : vector<8x128xbf16>, vector<128x128xbf16>, vector<8x128xf32> -> vector<8x128xf32>
    %cst_6 = arith.constant dense<0.000000e+00> : vector<128xf32>
    %10 = vector.multi_reduction <add>, %9, %cst_6 [0] : vector<8x128xf32> to vector<128xf32>
    %11 = vector.shape_cast %10 : vector<128xf32> to vector<1x128xf32>
    %12 = arith.mulf %9, %9 : vector<8x128xf32>
    %cst_7 = arith.constant dense<0.000000e+00> : vector<128xf32>
    %13 = vector.multi_reduction <add>, %12, %cst_7 [0] : vector<8x128xf32> to vector<128xf32>
    %14 = vector.shape_cast %13 : vector<128xf32> to vector<1x128xf32>
    %cst_8 = arith.constant 1.250000e-01 : f32
    %15 = vector.broadcast %cst_8 : f32 to vector<1x128xf32>
    %16 = arith.mulf %11, %15 : vector<1x128xf32>
    %cst_9 = arith.constant 1.250000e-01 : f32
    %17 = vector.broadcast %cst_9 : f32 to vector<1x128xf32>
    %18 = arith.mulf %14, %17 : vector<1x128xf32>
    %19 = arith.mulf %16, %16 : vector<1x128xf32>
    %20 = arith.subf %18, %19 : vector<1x128xf32>
    %cst_10 = arith.constant 0.000000e+00 : f32
    %21 = vector.broadcast %cst_10 : f32 to vector<1x128xf32>
    %22 = arith.maximumf %20, %21 : vector<1x128xf32>
    %cst_11 = arith.constant 9.99999974E-6 : f32
    %23 = vector.broadcast %cst_11 : f32 to vector<1x128xf32>
    %24 = arith.addf %22, %23 : vector<1x128xf32>
    %25 = math.rsqrt %24 : vector<1x128xf32>
    %26 = arith.mulf %2, %25 : vector<1x128xf32>
    %27 = arith.mulf %16, %26 : vector<1x128xf32>
    %28 = arith.subf %3, %27 : vector<1x128xf32>
    %29 = vector.broadcast %26 : vector<1x128xf32> to vector<8x128xf32>
    %30 = arith.mulf %9, %29 : vector<8x128xf32>
    %31 = vector.broadcast %28 : vector<1x128xf32> to vector<8x128xf32>
    %32 = arith.addf %30, %31 : vector<8x128xf32>
    %33 = math.tanh %32 : vector<8x128xf32>
    %34 = arith.truncf %33 : vector<8x128xf32> to vector<8x128xbf16>
    %c1 = arith.constant 1 : index
    %c0_12 = arith.constant 0 : index
    %c0_13 = arith.constant 0 : index
    %35 = vector.load %arg1[%c1, %c0_12, %c0_13] : memref<3x128x128xbf16, #tpu.memory_space<vmem>>, vector<1x128x128xbf16>
    %36 = vector.shape_cast %35 : vector<1x128x128xbf16> to vector<128x128xbf16>
    %cst_14 = arith.constant dense<0.000000e+00> : vector<8x128xf32>
    %37 = tpu.matmul %34, %36, %cst_14 {dimension_numbers = #tpu.dot_dimension_numbers<[1], [0], [0], [1], [0, 0, 1, 1], [], []>} : vector<8x128xbf16>, vector<128x128xbf16>, vector<8x128xf32> -> vector<8x128xf32>
    %cst_15 = arith.constant dense<0.000000e+00> : vector<128xf32>
    %38 = vector.multi_reduction <add>, %37, %cst_15 [0] : vector<8x128xf32> to vector<128xf32>
    %39 = vector.shape_cast %38 : vector<128xf32> to vector<1x128xf32>
    %40 = arith.mulf %37, %37 : vector<8x128xf32>
    %cst_16 = arith.constant dense<0.000000e+00> : vector<128xf32>
    %41 = vector.multi_reduction <add>, %40, %cst_16 [0] : vector<8x128xf32> to vector<128xf32>
    %42 = vector.shape_cast %41 : vector<128xf32> to vector<1x128xf32>
    %cst_17 = arith.constant 1.250000e-01 : f32
    %43 = vector.broadcast %cst_17 : f32 to vector<1x128xf32>
    %44 = arith.mulf %39, %43 : vector<1x128xf32>
    %cst_18 = arith.constant 1.250000e-01 : f32
    %45 = vector.broadcast %cst_18 : f32 to vector<1x128xf32>
    %46 = arith.mulf %42, %45 : vector<1x128xf32>
    %47 = arith.mulf %44, %44 : vector<1x128xf32>
    %48 = arith.subf %46, %47 : vector<1x128xf32>
    %cst_19 = arith.constant 0.000000e+00 : f32
    %49 = vector.broadcast %cst_19 : f32 to vector<1x128xf32>
    %50 = arith.maximumf %48, %49 : vector<1x128xf32>
    %cst_20 = arith.constant 9.99999974E-6 : f32
    %51 = vector.broadcast %cst_20 : f32 to vector<1x128xf32>
    %52 = arith.addf %50, %51 : vector<1x128xf32>
    %53 = math.rsqrt %52 : vector<1x128xf32>
    %54 = arith.mulf %4, %53 : vector<1x128xf32>
    %55 = arith.mulf %44, %54 : vector<1x128xf32>
    %56 = arith.subf %5, %55 : vector<1x128xf32>
    %57 = vector.broadcast %54 : vector<1x128xf32> to vector<8x128xf32>
    %58 = arith.mulf %37, %57 : vector<8x128xf32>
    %59 = vector.broadcast %56 : vector<1x128xf32> to vector<8x128xf32>
    %60 = arith.addf %58, %59 : vector<8x128xf32>
    %cst_21 = arith.constant 0.000000e+00 : f32
    %61 = vector.broadcast %cst_21 : f32 to vector<8x128xf32>
    %62 = arith.maximumf %60, %61 : vector<8x128xf32>
    %63 = arith.truncf %62 : vector<8x128xf32> to vector<8x128xbf16>
    %c2 = arith.constant 2 : index
    %c0_22 = arith.constant 0 : index
    %c0_23 = arith.constant 0 : index
    %64 = vector.load %arg1[%c2, %c0_22, %c0_23] : memref<3x128x128xbf16, #tpu.memory_space<vmem>>, vector<1x128x128xbf16>
    %65 = vector.shape_cast %64 : vector<1x128x128xbf16> to vector<128x128xbf16>
    %cst_24 = arith.constant dense<0.000000e+00> : vector<8x128xf32>
    %66 = tpu.matmul %63, %65, %cst_24 {dimension_numbers = #tpu.dot_dimension_numbers<[1], [0], [0], [1], [0, 0, 1, 1], [], []>} : vector<8x128xbf16>, vector<128x128xbf16>, vector<8x128xf32> -> vector<8x128xf32>
    %67 = vector.broadcast %6 : vector<1x128xf32> to vector<8x128xf32>
    %68 = arith.addf %66, %67 : vector<8x128xf32>
    %c0_25 = arith.constant 0 : index
    %c0_26 = arith.constant 0 : index
    %69 = vector.load %arg3[%c0_25, %c0_26] : memref<8x128xf32, #tpu.memory_space<vmem>>, vector<8x128xf32>
    tpu.vector_store %arg3[%c0_25, %c0_26], %68 {strides = array<i32>} : memref<8x128xf32, #tpu.memory_space<vmem>>, vector<8x128xf32>,
    return
  }
}

</mosaic_0001>

<llo_original>
// kernel: tpu_custom_call.1
$region0: #{tpu_custom_call.1}
  #allocation0 [shape = 'u32[]', space=smem, size = 0x4, offset = 0x4, fixed_abs, tag = 'smem constant byte address 0x4 - core index']
  #allocation1 [shape = 'u32[72,128]{1,0:T(1,128)}', space=vmem, size = 0x9000, scoped, tag = 'internal scratch']
  %s0 = inlined_call_operand.hbm [shape: bf16[8,128], index: 0, kind: input, shape index: {}]
  %s1 = inlined_call_operand.hbm [shape: bf16[3,128,128], index: 1, kind: input, shape index: {}]
  %s2 = inlined_call_operand.hbm [shape: f32[5,128], index: 2, kind: input, shape index: {}]
  %s3 = inlined_call_operand.hbm [shape: f32[8,128], index: 3, kind: output, shape index: {}]
  %s4 = sld [smem:[#allocation0]]
  $region34: #{tpu_custom_call.1} parent=0
    _
  %s6 = ssub.s32 1, %s4
  %s7 = scalar_select 0, %s6, %s4
  $region1: #{tpu_custom_call.1} parent=0
    #allocation2 [shape = 'u8[2048]{0}', space=vmem, size = 0x800, scoped, tag = 'input window, operand 0, single buffered']
    #allocation3 [shape = 's32[1]{0}', space=sflag, size = 0x4, scoped, tag = 'scoped memory for tpu_custom_call.1']
    #allocation4 [shape = 's32[1]{0}', space=sflag, size = 0x4, scoped, tag = 'scoped memory for tpu_custom_call.1']
    #allocation5 [shape = 'u8[98304]{0}', space=vmem, size = 0x18000, scoped, tag = 'input window, operand 1, single buffered']
    #allocation6 [shape = 's32[1]{0}', space=sflag, size = 0x4, scoped, tag = 'scoped memory for tpu_custom_call.1']
    #allocation7 [shape = 'u8[4096]{0}', space=vmem, size = 0x1000, scoped, tag = 'input window, operand 2, single buffered']
    #allocation8 [shape = 'u8[4096]{0}', space=vmem, size = 0x1000, scoped, tag = 'output window, operand 0, single buffered']
    %8 = vsyncpa [#allocation3], 0
    %9 = vsyncpa [#allocation6], 0
    %10 = vsyncpa [#allocation4], 0
    // Predicated region
    $region2: #{tpu_custom_call.1} parent=1 // pred_check
      _
    $region3: #{tpu_custom_call.1} parent=1 // pred_check_branch
      %12 = sbr.rel (0) target = $region5
    $region4: #{tpu_custom_call.1} parent=1 // pred_region
      %14 = vsyncadd [#allocation3], 0
      %s16 = sshll.u32 %s0, 4
      %s17 = int_to_ptr.hbm [resolvable:$true] %s16
      %s18 = sshll.u32 [#allocation2], 4
      %s19 = int_to_ptr.vmem [resolvable:$true] %s18
      %21 = dma.hbm_to_vmem [thread:$0]  %s17, 64, %s19, [#allocation3]
    $region5: #{tpu_custom_call.1} parent=1 // pred_fallthru
      _
    // Predicated region
    $region6: #{tpu_custom_call.1} parent=1 // pred_check
      _
    $region7: #{tpu_custom_call.1} parent=1 // pred_check_branch
      %23 = sbr.rel (0) target = $region9
    $region8: #{tpu_custom_call.1} parent=1 // pred_region
      %25 = vsyncadd [#allocation6], 0
      %s26 = sshll.u32 %s1, 4
      %s27 = int_to_ptr.hbm [resolvable:$true] %s26
      %s28 = sshll.u32 [#allocation5], 4
      %s29 = int_to_ptr.vmem [resolvable:$true] %s28
      %34 = dma.hbm_to_vmem [thread:$0]  %s27, 3072, %s29, [#allocation6], 64, 64, 4
    $region9: #{tpu_custom_call.1} parent=1 // pred_fallthru
      _
    // Predicated region
    $region10: #{tpu_custom_call.1} parent=1 // pred_check
      _
    $region11: #{tpu_custom_call.1} parent=1 // pred_check_branch
      %36 = sbr.rel (0) target = $region13
    $region12: #{tpu_custom_call.1} parent=1 // pred_region
      %38 = vsyncadd [#allocation6], 0
      %s40 = sshll.u32 %s2, 4
      %s41 = int_to_ptr.hbm [resolvable:$true] %s40
      %s42 = sshll.u32 [#allocation7], 4
      %s43 = int_to_ptr.vmem [resolvable:$true] %s42
      %45 = dma.hbm_to_vmem [thread:$0]  %s41, 128, %s43, [#allocation6]
    $region13: #{tpu_custom_call.1} parent=1 // pred_fallthru
      _
    // Predicated region
    $region14: #{tpu_custom_call.1} parent=1 // pred_check
      _
    $region15: #{tpu_custom_call.1} parent=1 // pred_check_branch
      %47 = sbr.rel (0) target = $region17
    $region16: #{tpu_custom_call.1} parent=1 // pred_region
      %49 = dma.done [#allocation3], 64
    $region17: #{tpu_custom_call.1} parent=1 // pred_fallthru
      _
    // Predicated region
    $region18: #{tpu_custom_call.1} parent=1 // pred_check
      _
    $region19: #{tpu_custom_call.1} parent=1 // pred_check_branch
      %51 = sbr.rel (0) target = $region21
    $region20: #{tpu_custom_call.1} parent=1 // pred_region
      %53 = dma.done [#allocation6], 3072
    $region21: #{tpu_custom_call.1} parent=1 // pred_fallthru
      _
    // Predicated region
    $region22: #{tpu_custom_call.1} parent=1 // pred_check
      _
    $region23: #{tpu_custom_call.1} parent=1 // pred_check_branch
      %55 = sbr.rel (0) target = $region25
    $region24: #{tpu_custom_call.1} parent=1 // pred_region
      %57 = dma.done [#allocation6], 128
    $region25: #{tpu_custom_call.1} parent=1 // pred_fallthru
      _
    %v58 = vld [vmem:[#allocation2] sm:$0xf]
    %v59 = vld [vmem:[#allocation7] sm:$0x1f]
    %v60 = vld [vmem:[#allocation5] sm:$0xf]
    %v61 = vld [vmem:[#allocation5 + $0x4] sm:$0xf]
    %v62 = vld [vmem:[#allocation5 + $0x8] sm:$0xf]
    %v63 = vld [vmem:[#allocation5 + $0xc] sm:$0xf]
    %v64 = vld [vmem:[#allocation5 + $0x10] sm:$0xf]
    %v65 = vld [vmem:[#allocation5 + $0x14] sm:$0xf]
    %v66 = vld [vmem:[#allocation5 + $0x18] sm:$0xf]
    %v67 = vld [vmem:[#allocation5 + $0x1c] sm:$0xf]
    %v68 = vld [vmem:[#allocation5 + $0x20] sm:$0xf]
    %v69 = vld [vmem:[#allocation5 + $0x24] sm:$0xf]
    %v70 = vld [vmem:[#allocation5 + $0x28] sm:$0xf]
    %v71 = vld [vmem:[#allocation5 + $0x2c] sm:$0xf]
    %v72 = vld [vmem:[#allocation5 + $0x30] sm:$0xf]
    %v73 = vld [vmem:[#allocation5 + $0x34] sm:$0xf]
    %v74 = vld [vmem:[#allocation5 + $0x38] sm:$0xf]
    %v75 = vld [vmem:[#allocation5 + $0x3c] sm:$0xf]
    %v92 = vunpack.c.l.b16 %v60
    %v93 = vunpack.c.l.b16 %v61
    %v94 = vunpack.c.l.b16 %v62
    %v95 = vunpack.c.l.b16 %v63
    %v96 = vunpack.c.l.b16 %v64
    %v97 = vunpack.c.l.b16 %v65
    %v98 = vunpack.c.l.b16 %v66
    %v99 = vunpack.c.l.b16 %v67
    %v100 = vunpack.c.l.b16 %v68
    %v101 = vunpack.c.l.b16 %v69
    %v102 = vunpack.c.l.b16 %v70
    %v103 = vunpack.c.l.b16 %v71
    %v104 = vunpack.c.l.b16 %v72
    %v105 = vunpack.c.l.b16 %v73
    %v106 = vunpack.c.l.b16 %v74
    %v107 = vunpack.c.l.b16 %v75
    %v108 = vpack.c.b16 %v93, %v92
    %v109 = vpack.c.b16 %v95, %v94
    %v110 = vpack.c.b16 %v97, %v96
    %v111 = vpack.c.b16 %v99, %v98
    %v112 = vpack.c.b16 %v101, %v100
    %v113 = vpack.c.b16 %v103, %v102
    %v114 = vpack.c.b16 %v105, %v104
    %v115 = vpack.c.b16 %v107, %v106
    %124 = vmatpush.bf16.msra.mxu0 %v115
    %125 = vmatpush.bf16.msra.mxu0 %v114
    %126 = vmatpush.bf16.msra.mxu0 %v113
    %127 = vmatpush.bf16.msra.mxu0 %v112
    %128 = vmatpush.bf16.msra.mxu0 %v111
    %129 = vmatpush.bf16.msra.mxu0 %v110
    %130 = vmatpush.bf16.msra.mxu0 %v109
    %131 = vmatpush.bf16.msra.mxu0 %v108
    %132 = vmatmul.bf16.gmra.mxu0 %v58
    %v133 = vpop.f32.mrf.mxu0
    %v134 = vadd.f32 0.0, %v133
    %v135 = vpop.f32.mrf.mxu0
    %136 = vdwg.mxu0
    %v137 = vrot.slane %v134, 4
    %v138 = vadd.f32 %v134, %v137
    %v139 = vrot.slane %v138, 2
    %v140 = vadd.f32 %v138, %v139
    %v141 = vrot.slane %v140, 1
    %v142 = vadd.f32 %v140, %v141
    %v143 = vmul.f32 %v134, %v134
    %v144 = vrot.slane %v143, 4
    %v145 = vadd.f32 %v143, %v144
    %v146 = vrot.slane %v145, 2
    %v147 = vadd.f32 %v145, %v146
    %v148 = vrot.slane %v147, 1
    %v149 = vadd.f32 %v147, %v148
    %v150 = vmul.f32 %v142, 0.125
    %v151 = vmul.f32 %v149, 0.125
    %v152 = vmul.f32 %v150, %v150
    %v153 = vsub.f32 %v151, %v152
    %v154 = vmax.f32 %v153, 0.0
    %v155 = vadd.f32 %v154, 1e-05
    %v156 = vrsqrt.pop %v155
    %v157 = vmul.f32 %v156, %v155
    %v158 = vmul.f32 %v157, %v156
    %v159 = vmul.f32 0.5, %v158
    %v160 = vsub.f32 1.5, %v159
    %v161 = vmul.f32 %v156, %v160
    %vm162 = vweird.f32 %v155
    %vm163 = vweird.f32 %v156
    %vm164 = vmor %vm162, %vm163
    %v165 = vsel %vm164, %v156, %v161
    %v166 = vmul.f32 %v59, %v165
    %v167 = vmul.f32 %v150, %v166
    %v169 = vrot.slane %v167, 7
    %v171 = vsub.f32 %v59, %v169
    %v172 = vperm.slane %v166, 0
    %v173 = vmul.f32 %v134, %v172
    %v174 = vperm.slane %v171, 1
    %v175 = vadd.f32 %v173, %v174
    %v176 = vtanh.pop %v175
    %v177 = vpack.c.bf16 %v176, %v176
    %s178 = scalar_lea.vmem [#allocation5], 64
    %v179 = vld [vmem:[%s178] sm:$0xf]
    %v180 = vld [vmem:[%s178 + $0x4] sm:$0xf]
    %v181 = vld [vmem:[%s178 + $0x8] sm:$0xf]
    %v182 = vld [vmem:[%s178 + $0xc] sm:$0xf]
    %v183 = vld [vmem:[%s178 + $0x10] sm:$0xf]
    %v184 = vld [vmem:[%s178 + $0x14] sm:$0xf]
    %v185 = vld [vmem:[%s178 + $0x18] sm:$0xf]
    %v186 = vld [vmem:[%s178 + $0x1c] sm:$0xf]
    %v187 = vld [vmem:[%s178 + $0x20] sm:$0xf]
    %v188 = vld [vmem:[%s178 + $0x24] sm:$0xf]
    %v189 = vld [vmem:[%s178 + $0x28] sm:$0xf]
    %v190 = vld [vmem:[%s178 + $0x2c] sm:$0xf]
    %v191 = vld [vmem:[%s178 + $0x30] sm:$0xf]
    %v192 = vld [vmem:[%s178 + $0x34] sm:$0xf]
    %v193 = vld [vmem:[%s178 + $0x38] sm:$0xf]
    %v194 = vld [vmem:[%s178 + $0x3c] sm:$0xf]
    %v211 = vunpack.c.l.b16 %v179
    %v212 = vunpack.c.l.b16 %v180
    %v213 = vunpack.c.l.b16 %v181
    %v214 = vunpack.c.l.b16 %v182
    %v215 = vunpack.c.l.b16 %v183
    %v216 = vunpack.c.l.b16 %v184
    %v217 = vunpack.c.l.b16 %v185
    %v218 = vunpack.c.l.b16 %v186
    %v219 = vunpack.c.l.b16 %v187
    %v220 = vunpack.c.l.b16 %v188
    %v221 = vunpack.c.l.b16 %v189
    %v222 = vunpack.c.l.b16 %v190
    %v223 = vunpack.c.l.b16 %v191
    %v224 = vunpack.c.l.b16 %v192
    %v225 = vunpack.c.l.b16 %v193
    %v226 = vunpack.c.l.b16 %v194
    %v227 = vpack.c.b16 %v212, %v211
    %v228 = vpack.c.b16 %v214, %v213
    %v229 = vpack.c.b16 %v216, %v215
    %v230 = vpack.c.b16 %v218, %v217
    %v231 = vpack.c.b16 %v220, %v219
    %v232 = vpack.c.b16 %v222, %v221
    %v233 = vpack.c.b16 %v224, %v223
    %v234 = vpack.c.b16 %v226, %v225
    %243 = vmatpush.bf16.msra.mxu0 %v234
    %244 = vmatpush.bf16.msra.mxu0 %v233
    %245 = vmatpush.bf16.msra.mxu0 %v232
    %246 = vmatpush.bf16.msra.mxu0 %v231
    %247 = vmatpush.bf16.msra.mxu0 %v230
    %248 = vmatpush.bf16.msra.mxu0 %v229
    %249 = vmatpush.bf16.msra.mxu0 %v228
    %250 = vmatpush.bf16.msra.mxu0 %v227
    %251 = vmatmul.bf16.gmra.mxu0 %v177
    %v252 = vpop.f32.mrf.mxu0
    %v253 = vadd.f32 0.0, %v252
    %v254 = vpop.f32.mrf.mxu0
    %255 = vdwg.mxu0
    %v256 = vrot.slane %v253, 4
    %v257 = vadd.f32 %v253, %v256
    %v258 = vrot.slane %v257, 2
    %v259 = vadd.f32 %v257, %v258
    %v260 = vrot.slane %v259, 1
    %v261 = vadd.f32 %v259, %v260
    %v262 = vmul.f32 %v253, %v253
    %v263 = vrot.slane %v262, 4
    %v264 = vadd.f32 %v262, %v263
    %v265 = vrot.slane %v264, 2
    %v266 = vadd.f32 %v264, %v265
    %v267 = vrot.slane %v266, 1
    %v268 = vadd.f32 %v266, %v267
    %v269 = vmul.f32 %v261, 0.125
    %v270 = vmul.f32 %v268, 0.125
    %v271 = vmul.f32 %v269, %v269
    %v272 = vsub.f32 %v270, %v271
    %v273 = vmax.f32 %v272, 0.0
    %v274 = vadd.f32 %v273, 1e-05
    %v275 = vrsqrt.pop %v274
    %v276 = vmul.f32 %v275, %v274
    %v277 = vmul.f32 %v276, %v275
    %v278 = vmul.f32 0.5, %v277
    %v279 = vsub.f32 1.5, %v278
    %v280 = vmul.f32 %v275, %v279
    %vm281 = vweird.f32 %v274
    %vm282 = vweird.f32 %v275
    %vm283 = vmor %vm281, %vm282
    %v284 = vsel %vm283, %v275, %v280
    %v285 = vmul.f32 %v59, %v284
    %v286 = vmul.f32 %v269, %v285
    %v288 = vrot.slane %v286, 7
    %v290 = vsub.f32 %v59, %v288
    %v291 = vperm.slane %v285, 2
    %v292 = vmul.f32 %v253, %v291
    %v293 = vperm.slane %v290, 3
    %v294 = vadd.f32 %v292, %v293
    %v295 = vmax.f32 %v294, 0.0
    %v296 = vpack.c.bf16 %v295, %v295
    %s297 = scalar_lea.vmem [#allocation5], 128
    %v298 = vld [vmem:[%s297] sm:$0xf]
    %v299 = vld [vmem:[%s297 + $0x4] sm:$0xf]
    %v300 = vld [vmem:[%s297 + $0x8] sm:$0xf]
    %v301 = vld [vmem:[%s297 + $0xc] sm:$0xf]
    %v302 = vld [vmem:[%s297 + $0x10] sm:$0xf]
    %v303 = vld [vmem:[%s297 + $0x14] sm:$0xf]
    %v304 = vld [vmem:[%s297 + $0x18] sm:$0xf]
    %v305 = vld [vmem:[%s297 + $0x1c] sm:$0xf]
    %v306 = vld [vmem:[%s297 + $0x20] sm:$0xf]
    %v307 = vld [vmem:[%s297 + $0x24] sm:$0xf]
    %v308 = vld [vmem:[%s297 + $0x28] sm:$0xf]
    %v309 = vld [vmem:[%s297 + $0x2c] sm:$0xf]
    %v310 = vld [vmem:[%s297 + $0x30] sm:$0xf]
    %v311 = vld [vmem:[%s297 + $0x34] sm:$0xf]
    %v312 = vld [vmem:[%s297 + $0x38] sm:$0xf]
    %v313 = vld [vmem:[%s297 + $0x3c] sm:$0xf]
    %v314 = vperm.slane %v59, 4
    %v331 = vunpack.c.l.b16 %v298
    %v332 = vunpack.c.l.b16 %v299
    %v333 = vunpack.c.l.b16 %v300
    %v334 = vunpack.c.l.b16 %v301
    %v335 = vunpack.c.l.b16 %v302
    %v336 = vunpack.c.l.b16 %v303
    %v337 = vunpack.c.l.b16 %v304
    %v338 = vunpack.c.l.b16 %v305
    %v339 = vunpack.c.l.b16 %v306
    %v340 = vunpack.c.l.b16 %v307
    %v341 = vunpack.c.l.b16 %v308
    %v342 = vunpack.c.l.b16 %v309
    %v343 = vunpack.c.l.b16 %v310
    %v344 = vunpack.c.l.b16 %v311
    %v345 = vunpack.c.l.b16 %v312
    %v346 = vunpack.c.l.b16 %v313
    %v347 = vpack.c.b16 %v332, %v331
    %v348 = vpack.c.b16 %v334, %v333
    %v349 = vpack.c.b16 %v336, %v335
    %v350 = vpack.c.b16 %v338, %v337
    %v351 = vpack.c.b16 %v340, %v339
    %v352 = vpack.c.b16 %v342, %v341
    %v353 = vpack.c.b16 %v344, %v343
    %v354 = vpack.c.b16 %v346, %v345
    %363 = vmatpush.bf16.msra.mxu0 %v354
    %364 = vmatpush.bf16.msra.mxu0 %v353
    %365 = vmatpush.bf16.msra.mxu0 %v352
    %366 = vmatpush.bf16.msra.mxu0 %v351
    %367 = vmatpush.bf16.msra.mxu0 %v350
    %368 = vmatpush.bf16.msra.mxu0 %v349
    %369 = vmatpush.bf16.msra.mxu0 %v348
    %370 = vmatpush.bf16.msra.mxu0 %v347
    %371 = vmatmul.bf16.gmra.mxu0 %v296
    %v372 = vpop.f32.mrf.mxu0
    %v373 = vadd.f32 %v314, %v372
    %v374 = vpop.f32.mrf.mxu0
    %375 = vdwg.mxu0
    %376 = vst [vmem:[#allocation8] sm:$0xff] %v373
    // Predicated region
    $region26: #{tpu_custom_call.1} parent=1 // pred_check
      _
    $region27: #{tpu_custom_call.1} parent=1 // pred_check_branch
      %378 = sbr.rel (0) target = $region29
    $region28: #{tpu_custom_call.1} parent=1 // pred_region
      %380 = vsyncadd [#allocation4], 0
      %s382 = sshll.u32 [#allocation8], 4
      %s383 = int_to_ptr.vmem [resolvable:$true] %s382
      %s384 = sshll.u32 %s3, 4
      %s385 = int_to_ptr.hbm [resolvable:$true] %s384
      %387 = dma.vmem_to_hbm [thread:$0]  %s383, 128, %s385, [#allocation4]
    $region29: #{tpu_custom_call.1} parent=1 // pred_fallthru
      _
    // Predicated region
    $region30: #{tpu_custom_call.1} parent=1 // pred_check
      _
    $region31: #{tpu_custom_call.1} parent=1 // pred_check_branch
      %389 = sbr.rel (0) target = $region33
    $region32: #{tpu_custom_call.1} parent=1 // pred_region
      %391 = dma.done [#allocation4], 128
    $region33: #{tpu_custom_call.1} parent=1 // pred_fallthru
      _
    %392 = vsyncpa [#allocation3], 1
    %393 = vsyncpa [#allocation6], 1
    %394 = vsyncpa [#allocation4], 1

</llo_original>
